<compile_context>
chip_gen: v7x
topology: tpu7x:2x2x1
jax: 0.10.0
libtpu: 0.0.40
codegen_flags: <defaults>
</compile_context>

<pallas_src>
import math

import jax
import jax.numpy as jnp
import numpy as np
from jax.experimental import pallas as pl
from jax.experimental.pallas import tpu as pltpu


def _score_mutation_kernel(x_ref, out_ref, expand_ref, o_ref):
    # x_ref:      (TR, pack)        native-dtype scores, `pack` seq positions per row
    # out_ref:    (TR, pack*embed)  native-dtype values (lane-dense)
    # expand_ref: (pack, pack*embed) constant 0/1 block-diagonal expansion matrix (f32)
    # o_ref:      (TR, pack*embed)
    xv = x_ref[...]
    one = jnp.ones((), dtype=xv.dtype)                 # compare in x's native dtype
    ind = (xv == one).astype(jnp.float32)              # (TR, pack) indicator
    # repeat_interleave via MXU: (TR, pack) @ (pack, pack*embed) -> expanded 0/1 mask
    mask = jnp.dot(ind, expand_ref[...], preferred_element_type=jnp.float32)
    # single f32 multiply (keeps NaN * 0 = NaN semantics of the PyTorch reference)
    o_ref[...] = (out_ref[...].astype(jnp.float32) * mask).astype(o_ref.dtype)


def _choose_pack(seq_pad, embed, base, target_lanes=512):
    """Packing so (pack*embed) % 128 == 0, pack | seq_pad, lane width <= ~512."""
    pack = base
    while seq_pad % (pack * 2) == 0 and (pack * 2) * embed <= max(target_lanes, base * embed):
        pack *= 2
    return pack


def _choose_row_tile(rows, row_bytes, target_bytes=4 << 20, min_steps=8):
    """Multiple-of-8 row tile: <= ~4 MiB per buffer, and >= min_steps grid steps
    when enough rows exist (v7x 2-TC split via dimension_semantics)."""
    rows8 = -(-rows // 8) * 8
    cap = max(8, (target_bytes // max(row_bytes, 1)) // 8 * 8)
    tr = min(rows8, cap)
    step_cap = (rows8 // min_steps) // 8 * 8
    if step_cap >= 8:
        tr = min(tr, step_cap)
    return max(tr, 8)


def score_mutation_forward(out, x, embed):
    """Pallas equivalent of MyScoreMutation.forward(out, x).

    out: (B, S*embed, 1)  ->  returns (B, S*embed) in out's dtype
    x:   (B, S) scores; positions where score == 1 (native-dtype compare) pass through.
    """
    B, SE, last = out.shape
    assert last == 1
    S = x.shape[1]
    assert SE == S * embed

    # --- lane-dense packing (pad S so the packing divides it) ---
    base = 128 // math.gcd(embed, 128)                 # smallest pack with lane-multiple width
    S_pad = -(-S // base) * base
    if S_pad != S:
        out = jnp.pad(out, ((0, 0), (0, (S_pad - S) * embed), (0, 0)))
        x = jnp.pad(x, ((0, 0), (0, S_pad - S)))       # padded scores are 0 -> masked out

    pack = _choose_pack(S_pad, embed, base)
    cols = pack * embed
    rows = B * (S_pad // pack)

    out2 = out.reshape(rows, cols)                     # contiguous reshape, native dtype kept
    x2 = x.reshape(rows, pack)                         # native dtype kept

    # --- row tiling (pad rows to a multiple of the tile) ---
    tr = _choose_row_tile(rows, cols * out2.dtype.itemsize)
    rows_pad = -(-rows // tr) * tr
    if rows_pad != rows:
        out2 = jnp.pad(out2, ((0, rows_pad - rows), (0, 0)))
        x2 = jnp.pad(x2, ((0, rows_pad - rows), (0, 0)))
    grid = (rows_pad // tr,)

    # constant block-diagonal expansion matrix: expand[p, c] = 1.0 iff c // embed == p
    expand = (jnp.arange(cols, dtype=jnp.int32)[None, :] // embed
              == jnp.arange(pack, dtype=jnp.int32)[:, None]).astype(jnp.float32)

    tile_bytes = tr * cols * out2.dtype.itemsize
    vmem_limit = int(min(2 * 2 * tile_bytes + (8 << 20), 56 << 20))

    res = pl.pallas_call(
        _score_mutation_kernel,
        out_shape=jax.ShapeDtypeStruct((rows_pad, cols), out2.dtype),
        grid=grid,
        in_specs=[
            pl.BlockSpec((tr, pack), lambda i: (i, 0)),
            pl.BlockSpec((tr, cols), lambda i: (i, 0)),
            pl.BlockSpec((pack, cols), lambda i: (0, 0)),   # constant: stays resident
        ],
        out_specs=pl.BlockSpec((tr, cols), lambda i: (i, 0)),
        compiler_params=pltpu.CompilerParams(
            dimension_semantics=("parallel",),              # shard row grid over v7x's 2 TCs
            vmem_limit_bytes=vmem_limit,
        ),
    )(x2, out2, expand)

    return res[:rows].reshape(B, S_pad * embed)[:, :SE]


def _ref_forward(out_np, x_np, embed):
    mask = np.repeat((np.asarray(x_np) == 1).astype(np.float32), embed, axis=1)
    return np.asarray(out_np).squeeze(-1) * mask


if __name__ == "__main__":
    # --- small demo consistent with the module: batch=2, seq=8, embed=32 ---
    B, S, E = 2, 8, 32
    key = jax.random.PRNGKey(0)
    k1, k2, k3, k4, k5, k6 = jax.random.split(key, 6)

    x_small = jax.random.randint(k1, (B, S), 0, 3, dtype=jnp.int32)   # scores in {0,1,2}
    out_small = jax.random.normal(k2, (B, S * E, 1), dtype=jnp.float32)

    y_small = jax.block_until_ready(score_mutation_forward(out_small, x_small, E))
    assert y_small.shape == (B, S * E)
    assert np.allclose(np.asarray(y_small), _ref_forward(out_small, x_small, E),
                       atol=1e-6), "small-shape mismatch"

    # --- larger check: grid > 1 (double-buffered tiles), float scores (1.5 must NOT pass) ---
    B2, S2 = 16, 2048
    x_big = jax.random.choice(k3, jnp.array([0.0, 1.0, 1.5, 2.0], jnp.float32), (B2, S2))
    out_big = jax.random.normal(k4, (B2, S2 * E, 1), dtype=jnp.float32)

    y_big = jax.block_until_ready(score_mutation_forward(out_big, x_big, E))
    assert np.allclose(np.asarray(y_big), _ref_forward(out_big, x_big, E),
                       atol=1e-6), "large-shape mismatch"

    # --- ragged check: exercises the S / row padding fallback path ---
    B3, S3 = 3, 10
    x_rag = jax.random.randint(k5, (B3, S3), 0, 3, dtype=jnp.int32)
    out_rag = jax.random.normal(k6, (B3, S3 * E, 1), dtype=jnp.float32)

    y_rag = jax.block_until_ready(score_mutation_forward(out_rag, x_rag, E))
    assert y_rag.shape == (B3, S3 * E)
    assert np.allclose(np.asarray(y_rag), _ref_forward(out_rag, x_rag, E),
                       atol=1e-6), "ragged-shape mismatch"

    print("KERNEL_OK")
</pallas_src>

<mosaic_0001>
module attributes {stable_mosaic.version = 11 : i64} {
  func.func @_score_mutation_kernel(%arg0: i32, %arg1: memref<8x8xi32, #tpu.memory_space<vmem>>, %arg2: memref<8x256xf32, #tpu.memory_space<vmem>>, %arg3: memref<8x256xf32, #tpu.memory_space<vmem>>, %arg4: memref<8x256xf32, #tpu.memory_space<vmem>>) attributes {dimension_semantics = [#tpu.dimension_semantics<parallel>], iteration_bounds = array<i64: 1>, scalar_prefetch = 0 : i64, scratch_operands = 0 : i64, tpu.core_type = #tpu.core_type<tc>, window_params = [{transform_indices = @transform_0, window_bounds = array<i64: 8, 8>}, {transform_indices = @transform_1, window_bounds = array<i64: 8, 256>}, {pipeline_mode = #tpu.pipeline_mode<synchronous>, transform_indices = @transform_2, window_bounds = array<i64: 8, 256>}, {transform_indices = @transform_3, window_bounds = array<i64: 8, 256>}]} {
    %c0 = arith.constant 0 : index
    %c0_0 = arith.constant 0 : index
    %0 = vector.load %arg1[%c0, %c0_0] : memref<8x8xi32, #tpu.memory_space<vmem>>, vector<8x8xi32>
    %c1_i32 = arith.constant 1 : i32
    %1 = vector.broadcast %c1_i32 : i32 to vector<8x8xi32>
    %2 = arith.cmpi eq, %0, %1 : vector<8x8xi32>
    %3 = arith.extui %2 : vector<8x8xi1> to vector<8x8xi32>
    %4 = arith.sitofp %3 : vector<8x8xi32> to vector<8x8xf32>
    %c0_1 = arith.constant 0 : index
    %c0_2 = arith.constant 0 : index
    %5 = vector.load %arg3[%c0_1, %c0_2] : memref<8x256xf32, #tpu.memory_space<vmem>>, vector<8x256xf32>
    %cst = arith.constant dense<0.000000e+00> : vector<8x256xf32>
    %6 = tpu.matmul %4, %5, %cst {dimension_numbers = #tpu.dot_dimension_numbers<[1], [0], [0], [1], [0, 0, 1, 1], [], []>} : vector<8x8xf32>, vector<8x256xf32>, vector<8x256xf32> -> vector<8x256xf32>
    %c0_3 = arith.constant 0 : index
    %c0_4 = arith.constant 0 : index
    %7 = vector.load %arg2[%c0_3, %c0_4] : memref<8x256xf32, #tpu.memory_space<vmem>>, vector<8x256xf32>
    %8 = arith.mulf %7, %6 : vector<8x256xf32>
    %c0_5 = arith.constant 0 : index
    %c0_6 = arith.constant 0 : index
    %9 = vector.load %arg4[%c0_5, %c0_6] : memref<8x256xf32, #tpu.memory_space<vmem>>, vector<8x256xf32>
    tpu.vector_store %arg4[%c0_5, %c0_6], %8 {strides = array<i32>} : memref<8x256xf32, #tpu.memory_space<vmem>>, vector<8x256xf32>,
    return
  }
  func.func @transform_0(%arg0: i32) -> (i32, i32) {
    %c0_i32 = arith.constant 0 : i32
    %c0_i32_0 = arith.constant 0 : i32
    return %arg0, %c0_i32 : i32, i32
  }
  func.func @transform_1(%arg0: i32) -> (i32, i32) {
    %c0_i32 = arith.constant 0 : i32
    %c0_i32_0 = arith.constant 0 : i32
    return %arg0, %c0_i32 : i32, i32
  }
  func.func @transform_2(%arg0: i32) -> (i32, i32) {
    %c0_i32 = arith.constant 0 : i32
    %c0_i32_0 = arith.constant 0 : i32
    %c0_i32_1 = arith.constant 0 : i32
    return %c0_i32, %c0_i32_0 : i32, i32
  }
  func.func @transform_3(%arg0: i32) -> (i32, i32) {
    %c0_i32 = arith.constant 0 : i32
    %c0_i32_0 = arith.constant 0 : i32
    return %arg0, %c0_i32 : i32, i32
  }
}

</mosaic_0001>

<llo_original>
// kernel: tpu_custom_call.1
$region0: #{tpu_custom_call.1}
  #allocation0 [shape = 'u32[]', space=smem, size = 0x4, offset = 0x4, fixed_abs, tag = 'smem constant byte address 0x4 - core index']
  #allocation1 [shape = 'u32[144,128]{1,0:T(1,128)}', space=vmem, size = 0x12000, scoped, tag = 'internal scratch']
  %s0 = inlined_call_operand.hbm [shape: s32[8,8], index: 0, kind: input, shape index: {}]
  %s1 = inlined_call_operand.hbm [shape: f32[8,256], index: 1, kind: input, shape index: {}]
  %s2 = inlined_call_operand.hbm [shape: f32[8,256], index: 2, kind: input, shape index: {}]
  %s3 = inlined_call_operand.hbm [shape: f32[8,256], index: 3, kind: output, shape index: {}]
  %s4 = sld [smem:[#allocation0]]
  $region34: #{tpu_custom_call.1} parent=0
    _
  %s6 = ssub.s32 1, %s4
  %s7 = scalar_select 0, %s6, %s4
  $region1: #{tpu_custom_call.1} parent=0
    #allocation2 [shape = 'u8[4096]{0}', space=vmem, size = 0x1000, scoped, tag = 'input window, operand 0, single buffered']
    #allocation3 [shape = 's32[1]{0}', space=sflag, size = 0x4, scoped, tag = 'scoped memory for tpu_custom_call.1']
    #allocation4 [shape = 's32[1]{0}', space=sflag, size = 0x4, scoped, tag = 'scoped memory for tpu_custom_call.1']
    #allocation5 [shape = 'u8[8192]{0}', space=vmem, size = 0x2000, scoped, tag = 'input window, operand 1, single buffered']
    #allocation6 [shape = 's32[1]{0}', space=sflag, size = 0x4, scoped, tag = 'scoped memory for tpu_custom_call.1']
    #allocation7 [shape = 'u8[8192]{0}', space=vmem, size = 0x2000, scoped, tag = 'input window, operand 2, single buffered']
    #allocation8 [shape = 'u8[8192]{0}', space=vmem, size = 0x2000, scoped, tag = 'output window, operand 0, single buffered']
    %8 = vsyncpa [#allocation3], 0
    %9 = vsyncpa [#allocation6], 0
    %10 = vsyncpa [#allocation4], 0
    // Predicated region
    $region2: #{tpu_custom_call.1} parent=1 // pred_check
      _
    $region3: #{tpu_custom_call.1} parent=1 // pred_check_branch
      %12 = sbr.rel (0) target = $region5
    $region4: #{tpu_custom_call.1} parent=1 // pred_region
      %s14 = ssub.s32 128, 128
      %15 = vsyncadd [#allocation3], %s14
      %s17 = sshll.u32 [#allocation2], 4
      %s18 = int_to_ptr.vmem [resolvable:$true] %s17
      %20 = dma.hbm_to_vmem [thread:$0]  %s0, 128, %s18, [#allocation3]
    $region5: #{tpu_custom_call.1} parent=1 // pred_fallthru
      _
    // Predicated region
    $region6: #{tpu_custom_call.1} parent=1 // pred_check
      _
    $region7: #{tpu_custom_call.1} parent=1 // pred_check_branch
      %22 = sbr.rel (0) target = $region9
    $region8: #{tpu_custom_call.1} parent=1 // pred_region
      %s24 = ssub.s32 256, 256
      %25 = vsyncadd [#allocation6], %s24
      %s27 = sshll.u32 [#allocation5], 4
      %s28 = int_to_ptr.vmem [resolvable:$true] %s27
      %30 = dma.hbm_to_vmem [thread:$0]  %s1, 256, %s28, [#allocation6]
    $region9: #{tpu_custom_call.1} parent=1 // pred_fallthru
      _
    // Predicated region
    $region10: #{tpu_custom_call.1} parent=1 // pred_check
      _
    $region11: #{tpu_custom_call.1} parent=1 // pred_check_branch
      %32 = sbr.rel (0) target = $region13
    $region12: #{tpu_custom_call.1} parent=1 // pred_region
      %s34 = ssub.s32 256, 256
      %35 = vsyncadd [#allocation6], %s34
      %s37 = sshll.u32 [#allocation7], 4
      %s38 = int_to_ptr.vmem [resolvable:$true] %s37
      %40 = dma.hbm_to_vmem [thread:$0]  %s2, 256, %s38, [#allocation6]
    $region13: #{tpu_custom_call.1} parent=1 // pred_fallthru
      _
    // Predicated region
    $region14: #{tpu_custom_call.1} parent=1 // pred_check
      _
    $region15: #{tpu_custom_call.1} parent=1 // pred_check_branch
      %42 = sbr.rel (0) target = $region17
    $region16: #{tpu_custom_call.1} parent=1 // pred_region
      %43 = dma.done [#allocation3], 128
    $region17: #{tpu_custom_call.1} parent=1 // pred_fallthru
      _
    // Predicated region
    $region18: #{tpu_custom_call.1} parent=1 // pred_check
      _
    $region19: #{tpu_custom_call.1} parent=1 // pred_check_branch
      %45 = sbr.rel (0) target = $region21
    $region20: #{tpu_custom_call.1} parent=1 // pred_region
      %46 = dma.done [#allocation6], 256
    $region21: #{tpu_custom_call.1} parent=1 // pred_fallthru
      _
    // Predicated region
    $region22: #{tpu_custom_call.1} parent=1 // pred_check
      _
    $region23: #{tpu_custom_call.1} parent=1 // pred_check_branch
      %48 = sbr.rel (0) target = $region25
    $region24: #{tpu_custom_call.1} parent=1 // pred_region
      %49 = dma.done [#allocation6], 256
    $region25: #{tpu_custom_call.1} parent=1 // pred_fallthru
      _
    %v50 = vld [vmem:[#allocation2] sm:$0xff]
    %vm51 = vcmp.eq.s32.totalorder %v50, 1
    %v52 = vsel %vm51, 1, 0
    %v53 = vcvt.s32.f32 %v52
    %v54 = vld [vmem:[#allocation7] sm:$0xff]
    %v55 = vld [vmem:[#allocation7 + $0x8] sm:$0xff]
    %vm56 = vcmask 64512
    %v58 = vsel %vm56, %v53, 0
    %60 = vmatprep.subr.mxu0 %v55
    %61 = vmatpush1.msra.mxu0 %v54
    %62 = vmatprep.subr.mxu0 0.0
    %63 = vmatpush1.msra.mxu0 0.0
    %64 = vmatprep.subr.mxu0 0.0
    %65 = vmatpush1.msra.mxu0 0.0
    %66 = vmatprep.subr.mxu0 0.0
    %67 = vmatpush1.msra.mxu0 0.0
    %68 = vmatprep.subr.mxu0 0.0
    %69 = vmatpush1.msra.mxu0 0.0
    %70 = vmatprep.subr.mxu0 0.0
    %71 = vmatpush1.msra.mxu0 0.0
    %72 = vmatprep.subr.mxu0 0.0
    %73 = vmatpush1.msra.mxu0 0.0
    %74 = vmatprep.subr.mxu0 0.0
    %75 = vmatpush1.msra.mxu0 0.0
    %76 = vmatprep.subr.mxu0 0.0
    %77 = vmatpush1.msra.mxu0 0.0
    %78 = vmatprep.subr.mxu0 0.0
    %79 = vmatpush1.msra.mxu0 0.0
    %80 = vmatprep.subr.mxu0 0.0
    %81 = vmatpush1.msra.mxu0 0.0
    %82 = vmatprep.subr.mxu0 0.0
    %83 = vmatpush1.msra.mxu0 0.0
    %84 = vmatprep.subr.mxu0 0.0
    %85 = vmatpush1.msra.mxu0 0.0
    %86 = vmatprep.subr.mxu0 0.0
    %87 = vmatpush1.msra.mxu0 0.0
    %88 = vmatprep.subr.mxu0 0.0
    %89 = vmatpush1.msra.mxu0 0.0
    %90 = vmatprep.subr.mxu0 0.0
    %91 = vmatpush1.msra.mxu0 0.0
    %92 = vmatprep.subr.mxu0 0.0
    %93 = vmatpush1.msra.mxu0 0.0
    %94 = vmatprep.subr.mxu0 0.0
    %95 = vmatpush1.msra.mxu0 0.0
    %96 = vmatprep.subr.mxu0 0.0
    %97 = vmatpush1.msra.mxu0 0.0
    %98 = vmatprep.subr.mxu0 0.0
    %99 = vmatpush1.msra.mxu0 0.0
    %100 = vmatprep.subr.mxu0 0.0
    %101 = vmatpush1.msra.mxu0 0.0
    %102 = vmatprep.subr.mxu0 0.0
    %103 = vmatpush1.msra.mxu0 0.0
    %104 = vmatprep.subr.mxu0 0.0
    %105 = vmatpush1.msra.mxu0 0.0
    %106 = vmatprep.subr.mxu0 0.0
    %107 = vmatpush1.msra.mxu0 0.0
    %108 = vmatprep.subr.mxu0 0.0
    %109 = vmatpush1.msra.mxu0 0.0
    %110 = vmatprep.subr.mxu0 0.0
    %111 = vmatpush1.msra.mxu0 0.0
    %112 = vmatprep.subr.mxu0 0.0
    %113 = vmatpush1.msra.mxu0 0.0
    %114 = vmatprep.subr.mxu0 0.0
    %115 = vmatpush1.msra.mxu0 0.0
    %116 = vmatprep.subr.mxu0 0.0
    %117 = vmatpush1.msra.mxu0 0.0
    %118 = vmatprep.subr.mxu0 0.0
    %119 = vmatpush1.msra.mxu0 0.0
    %120 = vmatprep.subr.mxu0 0.0
    %121 = vmatpush1.msra.mxu0 0.0
    %122 = vmatprep.subr.mxu0 0.0
    %123 = vmatpush1.msra.mxu0 0.0
    %124 = vmatprep.mubr.f32.mxu0 0.0
    %125 = vmatmul.mubr.f32.gmra.mrb[0].mxu0 %v58
    %v126 = vpop.f32.mrb[0].mxu0
    %v127 = vadd.f32 0.0, %v126
    %v128 = vpop.f32.mrb[0].mxu0
    %v129 = vadd.f32 0.0, %v128
    %130 = vdwg.mxu0
    %v131 = vld [vmem:[#allocation5] sm:$0xff]
    %v132 = vld [vmem:[#allocation5 + $0x8] sm:$0xff]
    %v133 = vmul.f32 %v131, %v127
    %v134 = vmul.f32 %v132, %v129
    %135 = vst [vmem:[#allocation8] sm:$0xff] %v133
    %136 = vst [vmem:[#allocation8 + $0x8] sm:$0xff] %v134
    // Predicated region
    $region26: #{tpu_custom_call.1} parent=1 // pred_check
      _
    $region27: #{tpu_custom_call.1} parent=1 // pred_check_branch
      %138 = sbr.rel (0) target = $region29
    $region28: #{tpu_custom_call.1} parent=1 // pred_region
      %s140 = ssub.s32 256, 256
      %141 = vsyncadd [#allocation4], %s140
      %s143 = sshll.u32 [#allocation8], 4
      %s144 = int_to_ptr.vmem [resolvable:$true] %s143
      %146 = dma.vmem_to_hbm [thread:$0]  %s144, 256, %s3, [#allocation4]
    $region29: #{tpu_custom_call.1} parent=1 // pred_fallthru
      _
    // Predicated region
    $region30: #{tpu_custom_call.1} parent=1 // pred_check
      _
    $region31: #{tpu_custom_call.1} parent=1 // pred_check_branch
      %148 = sbr.rel (0) target = $region33
    $region32: #{tpu_custom_call.1} parent=1 // pred_region
      %149 = dma.done [#allocation4], 256
    $region33: #{tpu_custom_call.1} parent=1 // pred_fallthru
      _
    %150 = vsyncpa [#allocation3], 1
    %151 = vsyncpa [#allocation6], 1
    %152 = vsyncpa [#allocation4], 1

</llo_original>
